<compile_context>
chip_gen: v7x
topology: tpu7x:2x2x1
jax: 0.10.0
libtpu: 0.0.40
codegen_flags: <defaults>
</compile_context>

<pallas_src>
import functools

import jax
import jax.numpy as jnp
from jax.experimental import pallas as pl
from jax.experimental.pallas import tpu as pltpu


def _round_up(x, m):
    return ((x + m - 1) // m) * m


def _ffn_kernel(*refs, apply_dropout, keep_threshold, scale):
    if apply_dropout:
        x_ref, w1_ref, b1_ref, w2_ref, b2_ref, bits_ref, o_ref = refs
    else:
        x_ref, w1_ref, b1_ref, w2_ref, b2_ref, o_ref = refs

    w1 = w1_ref[...]
    w2 = w2_ref[...]

    # First GEMM: operands in the weight dtype (bf16 if requested), f32 accumulate.
    h = jnp.dot(x_ref[...].astype(w1.dtype), w1,
                preferred_element_type=jnp.float32)
    h = jnp.maximum(h + b1_ref[...], 0.0)          # bias + ReLU in f32 on the VPU

    # Second GEMM: cast the activation to the weight dtype, f32 accumulate.
    y = jnp.dot(h.astype(w2.dtype), w2, preferred_element_type=jnp.float32)
    y = y + b2_ref[...]

    if apply_dropout:
        # Integer-threshold inverted dropout: keep iff bits >= p * 2^32.
        keep = bits_ref[...] >= jnp.uint32(keep_threshold)
        y = jnp.where(keep, y * jnp.float32(scale), 0.0)

    o_ref[...] = y.astype(o_ref.dtype)


def feed_forward(x, w1, b1, w2, b2, *, p_dropout=0.5, training=False,
                 rng_key=None, param_dtype=None):
    """x: [B, T, in_ch] -> [B, T, out_ch].  relu(x@W1+b1)@W2+b2 (+ dropout)."""
    B, T, in_ch = x.shape
    hidden = w1.shape[1]
    out_ch = w2.shape[1]
    out_dtype = x.dtype

    apply_dropout = bool(training) and float(p_dropout) > 0.0
    if apply_dropout and float(p_dropout) >= 1.0:
        # 1/(1-p) would be inf; torch drops everything -> all zeros.
        return jnp.zeros((B, T, out_ch), dtype=out_dtype)

    if param_dtype is not None:
        w1 = w1.astype(param_dtype)
        w2 = w2.astype(param_dtype)

    M = B * T
    x2d = x.reshape(M, in_ch)

    # Lane-dense channel padding (multiple of 128) and row padding to whole tiles.
    in_ch_p = _round_up(in_ch, 128)
    hidden_p = _round_up(hidden, 128)
    out_ch_p = _round_up(out_ch, 128)

    tile_target = 1024 if x.dtype == jnp.bfloat16 else 512
    tile_m = min(tile_target, _round_up(M, 8))
    M_p = _round_up(M, tile_m)

    x2d = jnp.pad(x2d, ((0, M_p - M), (0, in_ch_p - in_ch)))
    w1p = jnp.pad(w1, ((0, in_ch_p - in_ch), (0, hidden_p - hidden)))
    b1p = jnp.pad(b1.astype(jnp.float32), (0, hidden_p - hidden)).reshape(1, hidden_p)
    w2p = jnp.pad(w2, ((0, hidden_p - hidden), (0, out_ch_p - out_ch)))
    b2p = jnp.pad(b2.astype(jnp.float32), (0, out_ch_p - out_ch)).reshape(1, out_ch_p)

    grid = (M_p // tile_m,)

    in_specs = [
        pl.BlockSpec((tile_m, in_ch_p), lambda i: (i, 0)),     # x tile (streamed)
        pl.BlockSpec((in_ch_p, hidden_p), lambda i: (0, 0)),   # w1 (resident)
        pl.BlockSpec((1, hidden_p), lambda i: (0, 0)),         # b1 (resident)
        pl.BlockSpec((hidden_p, out_ch_p), lambda i: (0, 0)),  # w2 (resident)
        pl.BlockSpec((1, out_ch_p), lambda i: (0, 0)),         # b2 (resident)
    ]
    inputs = [x2d, w1p, b1p, w2p, b2p]

    keep_threshold = 0
    scale = 1.0
    if apply_dropout:
        if rng_key is None:
            rng_key = jax.random.PRNGKey(0)
        bits = jax.random.bits(rng_key, (M_p, out_ch_p), dtype=jnp.uint32)
        inputs.append(bits)
        in_specs.append(pl.BlockSpec((tile_m, out_ch_p), lambda i: (i, 0)))
        keep_threshold = min(int(round(float(p_dropout) * 2.0 ** 32)), 2 ** 32 - 1)
        scale = 1.0 / (1.0 - float(p_dropout))

    kernel = functools.partial(
        _ffn_kernel,
        apply_dropout=apply_dropout,
        keep_threshold=keep_threshold,
        scale=scale,
    )

    # Scoped-VMEM budget: resident weights/biases + double-buffered streamed tiles
    # + the [tile_m, hidden] f32 activation, with headroom.  Clamped so the small
    # default limits (16/32 MiB) don't shrink buffers and expose DMA latency.
    itemsize = lambda a: a.dtype.itemsize
    resident = sum(a.size * itemsize(a) for a in (w1p, b1p, w2p, b2p))
    streamed = 2 * (tile_m * in_ch_p * x2d.dtype.itemsize
                    + tile_m * out_ch_p * jnp.dtype(out_dtype).itemsize
                    + (tile_m * out_ch_p * 4 if apply_dropout else 0))
    activ = tile_m * hidden_p * 4 + tile_m * out_ch_p * 4
    vmem_limit = int((resident + streamed + activ) * 1.25) + (4 << 20)
    vmem_limit = max(32 << 20, min(vmem_limit, 100 << 20))

    out2d = pl.pallas_call(
        kernel,
        out_shape=jax.ShapeDtypeStruct((M_p, out_ch_p), out_dtype),
        grid=grid,
        in_specs=in_specs,
        out_specs=pl.BlockSpec((tile_m, out_ch_p), lambda i: (i, 0)),
        compiler_params=pltpu.CompilerParams(
            dimension_semantics=("parallel",),   # row tiles independent -> megacore
            vmem_limit_bytes=vmem_limit,
        ),
    )(*inputs)

    return out2d[:M, :out_ch].reshape(B, T, out_ch)


def _init_params(key, in_ch, out_ch):
    """Deterministic init mirroring nn.Linear's U(-1/sqrt(fan_in), 1/sqrt(fan_in))."""
    hidden = 4 * in_ch
    k1, k2, k3, k4 = jax.random.split(key, 4)
    lim1 = 1.0 / jnp.sqrt(in_ch)
    lim2 = 1.0 / jnp.sqrt(hidden)
    w1 = jax.random.uniform(k1, (in_ch, hidden), jnp.float32, -lim1, lim1)
    b1 = jax.random.uniform(k2, (hidden,), jnp.float32, -lim1, lim1)
    w2 = jax.random.uniform(k3, (hidden, out_ch), jnp.float32, -lim2, lim2)
    b2 = jax.random.uniform(k4, (out_ch,), jnp.float32, -lim2, lim2)
    return w1, b1, w2, b2


if __name__ == "__main__":
    B, T, in_ch, out_ch = 2, 8, 32, 32
    p_dropout = 0.5

    key = jax.random.PRNGKey(0)
    kx, kp, kd = jax.random.split(key, 3)
    x = jax.random.normal(kx, (B, T, in_ch), dtype=jnp.float32)
    w1, b1, w2, b2 = _init_params(kp, in_ch, out_ch)

    ref = jnp.maximum(x @ w1 + b1, 0.0) @ w2 + b2

    # 1) Eval-mode, f32 operands (dropout = identity) — tight check vs reference.
    out_eval = feed_forward(x, w1, b1, w2, b2, p_dropout=p_dropout, training=False)
    jax.block_until_ready(out_eval)
    assert out_eval.shape == (B, T, out_ch)
    assert jnp.allclose(out_eval, ref, atol=1e-5, rtol=1e-5)

    # 2) Eval-mode with bf16 matmul operands / f32 accumulation (MXU-friendly path).
    out_bf16 = feed_forward(x, w1, b1, w2, b2, p_dropout=p_dropout,
                            training=False, param_dtype=jnp.bfloat16)
    jax.block_until_ready(out_bf16)
    assert out_bf16.shape == (B, T, out_ch)
    assert jnp.allclose(out_bf16, ref, atol=5e-2, rtol=5e-2)

    # 3) Training-mode: inverted dropout inside the kernel.
    out_train = feed_forward(x, w1, b1, w2, b2, p_dropout=p_dropout,
                             training=True, rng_key=kd)
    jax.block_until_ready(out_train)
    assert out_train.shape == (B, T, out_ch)
    # Surviving elements equal the eval output scaled by 1/(1-p); dropped are 0.
    kept = out_train != 0
    assert jnp.allclose(jnp.where(kept, out_train, 0.0),
                        jnp.where(kept, out_eval / (1.0 - p_dropout), 0.0),
                        atol=1e-5, rtol=1e-5)

    print("KERNEL_OK")
</pallas_src>

<mosaic_0001>
module attributes {stable_mosaic.version = 11 : i64} {
  func.func @_ffn_kernel(%arg0: i32, %arg1: memref<16x128xf32, #tpu.memory_space<vmem>>, %arg2: memref<128x128xf32, #tpu.memory_space<vmem>>, %arg3: memref<1x128xf32, #tpu.memory_space<vmem>>, %arg4: memref<128x128xf32, #tpu.memory_space<vmem>>, %arg5: memref<1x128xf32, #tpu.memory_space<vmem>>, %arg6: memref<16x128xf32, #tpu.memory_space<vmem>>) attributes {dimension_semantics = [#tpu.dimension_semantics<parallel>], iteration_bounds = array<i64: 1>, scalar_prefetch = 0 : i64, scratch_operands = 0 : i64, tpu.core_type = #tpu.core_type<tc>, window_params = [{transform_indices = @transform_0, window_bounds = array<i64: 16, 128>}, {pipeline_mode = #tpu.pipeline_mode<synchronous>, transform_indices = @transform_1, window_bounds = array<i64: 128, 128>}, {pipeline_mode = #tpu.pipeline_mode<synchronous>, transform_indices = @transform_2, window_bounds = array<i64: 1, 128>}, {pipeline_mode = #tpu.pipeline_mode<synchronous>, transform_indices = @transform_3, window_bounds = array<i64: 128, 128>}, {pipeline_mode = #tpu.pipeline_mode<synchronous>, transform_indices = @transform_4, window_bounds = array<i64: 1, 128>}, {transform_indices = @transform_5, window_bounds = array<i64: 16, 128>}]} {
    %c0 = arith.constant 0 : index
    %c0_0 = arith.constant 0 : index
    %0 = vector.load %arg2[%c0, %c0_0] : memref<128x128xf32, #tpu.memory_space<vmem>>, vector<128x128xf32>
    %c0_1 = arith.constant 0 : index
    %c0_2 = arith.constant 0 : index
    %1 = vector.load %arg4[%c0_1, %c0_2] : memref<128x128xf32, #tpu.memory_space<vmem>>, vector<128x128xf32>
    %c0_3 = arith.constant 0 : index
    %c0_4 = arith.constant 0 : index
    %2 = vector.load %arg1[%c0_3, %c0_4] : memref<16x128xf32, #tpu.memory_space<vmem>>, vector<16x128xf32>
    %cst = arith.constant dense<0.000000e+00> : vector<16x128xf32>
    %3 = tpu.matmul %2, %0, %cst {dimension_numbers = #tpu.dot_dimension_numbers<[1], [0], [0], [1], [0, 0, 1, 1], [], []>} : vector<16x128xf32>, vector<128x128xf32>, vector<16x128xf32> -> vector<16x128xf32>
    %c0_5 = arith.constant 0 : index
    %c0_6 = arith.constant 0 : index
    %4 = vector.load %arg3[%c0_5, %c0_6] : memref<1x128xf32, #tpu.memory_space<vmem>>, vector<1x128xf32>
    %5 = vector.broadcast %4 : vector<1x128xf32> to vector<16x128xf32>
    %6 = arith.addf %3, %5 : vector<16x128xf32>
    %cst_7 = arith.constant 0.000000e+00 : f32
    %7 = vector.broadcast %cst_7 : f32 to vector<16x128xf32>
    %8 = arith.maximumf %6, %7 : vector<16x128xf32>
    %cst_8 = arith.constant dense<0.000000e+00> : vector<16x128xf32>
    %9 = tpu.matmul %8, %1, %cst_8 {dimension_numbers = #tpu.dot_dimension_numbers<[1], [0], [0], [1], [0, 0, 1, 1], [], []>} : vector<16x128xf32>, vector<128x128xf32>, vector<16x128xf32> -> vector<16x128xf32>
    %c0_9 = arith.constant 0 : index
    %c0_10 = arith.constant 0 : index
    %10 = vector.load %arg5[%c0_9, %c0_10] : memref<1x128xf32, #tpu.memory_space<vmem>>, vector<1x128xf32>
    %11 = vector.broadcast %10 : vector<1x128xf32> to vector<16x128xf32>
    %12 = arith.addf %9, %11 : vector<16x128xf32>
    %c0_11 = arith.constant 0 : index
    %c0_12 = arith.constant 0 : index
    %13 = vector.load %arg6[%c0_11, %c0_12] : memref<16x128xf32, #tpu.memory_space<vmem>>, vector<16x128xf32>
    tpu.vector_store %arg6[%c0_11, %c0_12], %12 {strides = array<i32>} : memref<16x128xf32, #tpu.memory_space<vmem>>, vector<16x128xf32>,
    return
  }
  func.func @transform_0(%arg0: i32) -> (i32, i32) {
    %c0_i32 = arith.constant 0 : i32
    %c0_i32_0 = arith.constant 0 : i32
    return %arg0, %c0_i32 : i32, i32
  }
  func.func @transform_1(%arg0: i32) -> (i32, i32) {
    %c0_i32 = arith.constant 0 : i32
    %c0_i32_0 = arith.constant 0 : i32
    %c0_i32_1 = arith.constant 0 : i32
    return %c0_i32, %c0_i32_0 : i32, i32
  }
  func.func @transform_2(%arg0: i32) -> (i32, i32) {
    %c0_i32 = arith.constant 0 : i32
    %c0_i32_0 = arith.constant 0 : i32
    %c0_i32_1 = arith.constant 0 : i32
    return %c0_i32, %c0_i32_0 : i32, i32
  }
  func.func @transform_3(%arg0: i32) -> (i32, i32) {
    %c0_i32 = arith.constant 0 : i32
    %c0_i32_0 = arith.constant 0 : i32
    %c0_i32_1 = arith.constant 0 : i32
    return %c0_i32, %c0_i32_0 : i32, i32
  }
  func.func @transform_4(%arg0: i32) -> (i32, i32) {
    %c0_i32 = arith.constant 0 : i32
    %c0_i32_0 = arith.constant 0 : i32
    %c0_i32_1 = arith.constant 0 : i32
    return %c0_i32, %c0_i32_0 : i32, i32
  }
  func.func @transform_5(%arg0: i32) -> (i32, i32) {
    %c0_i32 = arith.constant 0 : i32
    %c0_i32_0 = arith.constant 0 : i32
    return %arg0, %c0_i32 : i32, i32
  }
}

</mosaic_0001>

<llo_original>
// kernel: tpu_custom_call.1
$region0: #{tpu_custom_call.1}
  #allocation0 [shape = 'u32[]', space=smem, size = 0x4, offset = 0x4, fixed_abs, tag = 'smem constant byte address 0x4 - core index']
  #allocation1 [shape = 'u32[144,128]{1,0:T(1,128)}', space=vmem, size = 0x12000, scoped, tag = 'internal scratch']
  %s0 = inlined_call_operand.hbm [shape: f32[16,128], index: 0, kind: input, shape index: {}]
  %s1 = inlined_call_operand.hbm [shape: f32[128,128], index: 1, kind: input, shape index: {}]
  %s2 = inlined_call_operand.vmem [shape: f32[1,128], index: 2, kind: input, shape index: {}]
  %s3 = inlined_call_operand.hbm [shape: f32[128,128], index: 3, kind: input, shape index: {}]
  %s4 = inlined_call_operand.vmem [shape: f32[1,128], index: 4, kind: input, shape index: {}]
  %s5 = inlined_call_operand.hbm [shape: f32[16,128], index: 5, kind: output, shape index: {}]
  %s6 = sld [smem:[#allocation0]]
  $region42: #{tpu_custom_call.1} parent=0
    _
  %s8 = ssub.s32 1, %s6
  %s9 = scalar_select 0, %s8, %s6
  $region1: #{tpu_custom_call.1} parent=0
    #allocation2 [shape = 'u8[8192]{0}', space=vmem, size = 0x2000, scoped, tag = 'input window, operand 0, single buffered']
    #allocation3 [shape = 's32[1]{0}', space=sflag, size = 0x4, scoped, tag = 'scoped memory for tpu_custom_call.1']
    #allocation4 [shape = 's32[1]{0}', space=sflag, size = 0x4, scoped, tag = 'scoped memory for tpu_custom_call.1']
    #allocation5 [shape = 'u8[65536]{0}', space=vmem, size = 0x10000, scoped, tag = 'input window, operand 1, single buffered']
    #allocation6 [shape = 's32[1]{0}', space=sflag, size = 0x4, scoped, tag = 'scoped memory for tpu_custom_call.1']
    #allocation7 [shape = 'u8[65536]{0}', space=vmem, size = 0x10000, scoped, tag = 'input window, operand 3, single buffered']
    #allocation8 [shape = 'u8[8192]{0}', space=vmem, size = 0x2000, scoped, tag = 'output window, operand 0, single buffered']
    %10 = vsyncpa [#allocation3], 0
    %11 = vsyncpa [#allocation6], 0
    %12 = vsyncpa [#allocation4], 0
    // Predicated region
    $region2: #{tpu_custom_call.1} parent=1 // pred_check
      _
    $region3: #{tpu_custom_call.1} parent=1 // pred_check_branch
      %14 = sbr.rel (0) target = $region5
    $region4: #{tpu_custom_call.1} parent=1 // pred_region
      %s16 = ssub.s32 256, 256
      %17 = vsyncadd [#allocation3], %s16
      %s18 = sshll.u32 [#allocation2], 4
      %s19 = int_to_ptr.vmem [resolvable:$true] %s18
      %24 = dma.hbm_to_vmem [thread:$0]  %s0, 256, %s19, [#allocation3], 128, 128, 8
    $region5: #{tpu_custom_call.1} parent=1 // pred_fallthru
      _
    // Predicated region
    $region6: #{tpu_custom_call.1} parent=1 // pred_check
      _
    $region7: #{tpu_custom_call.1} parent=1 // pred_check_branch
      %26 = sbr.rel (0) target = $region9
    $region8: #{tpu_custom_call.1} parent=1 // pred_region
      %s28 = ssub.s32 2048, 2048
      %29 = vsyncadd [#allocation6], %s28
      %s30 = sshll.u32 [#allocation5], 4
      %s31 = int_to_ptr.vmem [resolvable:$true] %s30
      %36 = dma.hbm_to_vmem [thread:$0]  %s1, 2048, %s31, [#allocation6], 128, 128, 8
    $region9: #{tpu_custom_call.1} parent=1 // pred_fallthru
      _
    // Predicated region
    $region10: #{tpu_custom_call.1} parent=1 // pred_check
      _
    $region11: #{tpu_custom_call.1} parent=1 // pred_check_branch
      %38 = sbr.rel (0) target = $region13
    $region12: #{tpu_custom_call.1} parent=1 // pred_region
      _
    $region13: #{tpu_custom_call.1} parent=1 // pred_fallthru
      _
    // Predicated region
    $region14: #{tpu_custom_call.1} parent=1 // pred_check
      _
    $region15: #{tpu_custom_call.1} parent=1 // pred_check_branch
      %40 = sbr.rel (0) target = $region17
    $region16: #{tpu_custom_call.1} parent=1 // pred_region
      %s42 = ssub.s32 2048, 2048
      %43 = vsyncadd [#allocation6], %s42
      %s44 = sshll.u32 [#allocation7], 4
      %s45 = int_to_ptr.vmem [resolvable:$true] %s44
      %50 = dma.hbm_to_vmem [thread:$0]  %s3, 2048, %s45, [#allocation6], 128, 128, 8
    $region17: #{tpu_custom_call.1} parent=1 // pred_fallthru
      _
    // Predicated region
    $region18: #{tpu_custom_call.1} parent=1 // pred_check
      _
    $region19: #{tpu_custom_call.1} parent=1 // pred_check_branch
      %52 = sbr.rel (0) target = $region21
    $region20: #{tpu_custom_call.1} parent=1 // pred_region
      _
    $region21: #{tpu_custom_call.1} parent=1 // pred_fallthru
      _
    // Predicated region
    $region22: #{tpu_custom_call.1} parent=1 // pred_check
      _
    $region23: #{tpu_custom_call.1} parent=1 // pred_check_branch
      %54 = sbr.rel (0) target = $region25
    $region24: #{tpu_custom_call.1} parent=1 // pred_region
      %55 = dma.done [#allocation3], 256
    $region25: #{tpu_custom_call.1} parent=1 // pred_fallthru
      _
    // Predicated region
    $region26: #{tpu_custom_call.1} parent=1 // pred_check
      _
    $region27: #{tpu_custom_call.1} parent=1 // pred_check_branch
      %57 = sbr.rel (0) target = $region29
    $region28: #{tpu_custom_call.1} parent=1 // pred_region
      %58 = dma.done [#allocation6], 2048
    $region29: #{tpu_custom_call.1} parent=1 // pred_fallthru
      _
    // Predicated region
    $region30: #{tpu_custom_call.1} parent=1 // pred_check
      _
    $region31: #{tpu_custom_call.1} parent=1 // pred_check_branch
      %60 = sbr.rel (0) target = $region33
    $region32: #{tpu_custom_call.1} parent=1 // pred_region
      %61 = dma.done [#allocation6], 2048
    $region33: #{tpu_custom_call.1} parent=1 // pred_fallthru
      _
    %v62 = vld [vmem:[#allocation5] sm:$0xff]
    %v63 = vld [vmem:[#allocation5 + $0x8] sm:$0xff]
    %v64 = vld [vmem:[#allocation5 + $0x10] sm:$0xff]
    %v65 = vld [vmem:[#allocation5 + $0x18] sm:$0xff]
    %v66 = vld [vmem:[#allocation5 + $0x20] sm:$0xff]
    %v67 = vld [vmem:[#allocation5 + $0x28] sm:$0xff]
    %v68 = vld [vmem:[#allocation5 + $0x30] sm:$0xff]
    %v69 = vld [vmem:[#allocation5 + $0x38] sm:$0xff]
    %v70 = vld [vmem:[#allocation5 + $0x40] sm:$0xff]
    %v71 = vld [vmem:[#allocation5 + $0x48] sm:$0xff]
    %v72 = vld [vmem:[#allocation5 + $0x50] sm:$0xff]
    %v73 = vld [vmem:[#allocation5 + $0x58] sm:$0xff]
    %v74 = vld [vmem:[#allocation5 + $0x60] sm:$0xff]
    %v75 = vld [vmem:[#allocation5 + $0x68] sm:$0xff]
    %v76 = vld [vmem:[#allocation5 + $0x70] sm:$0xff]
    %v77 = vld [vmem:[#allocation5 + $0x78] sm:$0xff]
    %v78 = vld [vmem:[#allocation7] sm:$0xff]
    %v79 = vld [vmem:[#allocation7 + $0x8] sm:$0xff]
    %v80 = vld [vmem:[#allocation7 + $0x10] sm:$0xff]
    %v81 = vld [vmem:[#allocation7 + $0x18] sm:$0xff]
    %v82 = vld [vmem:[#allocation7 + $0x20] sm:$0xff]
    %v83 = vld [vmem:[#allocation7 + $0x28] sm:$0xff]
    %v84 = vld [vmem:[#allocation7 + $0x30] sm:$0xff]
    %v85 = vld [vmem:[#allocation7 + $0x38] sm:$0xff]
    %v86 = vld [vmem:[#allocation7 + $0x40] sm:$0xff]
    %v87 = vld [vmem:[#allocation7 + $0x48] sm:$0xff]
    %v88 = vld [vmem:[#allocation7 + $0x50] sm:$0xff]
    %v89 = vld [vmem:[#allocation7 + $0x58] sm:$0xff]
    %v90 = vld [vmem:[#allocation7 + $0x60] sm:$0xff]
    %v91 = vld [vmem:[#allocation7 + $0x68] sm:$0xff]
    %v92 = vld [vmem:[#allocation7 + $0x70] sm:$0xff]
    %v93 = vld [vmem:[#allocation7 + $0x78] sm:$0xff]
    %v94 = vld [vmem:[#allocation2] sm:$0xff]
    %v95 = vld [vmem:[#allocation2 + $0x8] sm:$0xff]
    %v96 = vld [vmem:[%s2] sm:$0x1]
    %v98 = vlaneseq
    %v99 = vshrl.u32 %v98, 7
    %v100 = vsub.s32 0, %v99
    %v101 = vrot.slane %v96, %v100
    %103 = vmatprep.subr.mxu0 0.0
    %104 = vmatpush1.msra.mxu0 %v62
    %105 = vmatprep.subr.mxu0 0.0
    %106 = vmatpush1.msra.mxu0 %v63
    %107 = vmatprep.subr.mxu0 0.0
    %108 = vmatpush1.msra.mxu0 %v64
    %109 = vmatprep.subr.mxu0 0.0
    %110 = vmatpush1.msra.mxu0 %v65
    %111 = vmatprep.subr.mxu0 0.0
    %112 = vmatpush1.msra.mxu0 %v66
    %113 = vmatprep.subr.mxu0 0.0
    %114 = vmatpush1.msra.mxu0 %v67
    %115 = vmatprep.subr.mxu0 0.0
    %116 = vmatpush1.msra.mxu0 %v68
    %117 = vmatprep.subr.mxu0 0.0
    %118 = vmatpush1.msra.mxu0 %v69
    %119 = vmatprep.subr.mxu0 0.0
    %120 = vmatpush1.msra.mxu0 %v70
    %121 = vmatprep.subr.mxu0 0.0
    %122 = vmatpush1.msra.mxu0 %v71
    %123 = vmatprep.subr.mxu0 0.0
    %124 = vmatpush1.msra.mxu0 %v72
    %125 = vmatprep.subr.mxu0 0.0
    %126 = vmatpush1.msra.mxu0 %v73
    %127 = vmatprep.subr.mxu0 0.0
    %128 = vmatpush1.msra.mxu0 %v74
    %129 = vmatprep.subr.mxu0 0.0
    %130 = vmatpush1.msra.mxu0 %v75
    %131 = vmatprep.subr.mxu0 0.0
    %132 = vmatpush1.msra.mxu0 %v76
    %133 = vmatprep.subr.mxu0 0.0
    %134 = vmatpush1.msra.mxu0 %v77
    %135 = vmatprep.subr.mxu0 0.0
    %136 = vmatpush1.msra.mxu0 0.0
    %137 = vmatprep.subr.mxu0 0.0
    %138 = vmatpush1.msra.mxu0 0.0
    %139 = vmatprep.subr.mxu0 0.0
    %140 = vmatpush1.msra.mxu0 0.0
    %141 = vmatprep.subr.mxu0 0.0
    %142 = vmatpush1.msra.mxu0 0.0
    %143 = vmatprep.subr.mxu0 0.0
    %144 = vmatpush1.msra.mxu0 0.0
    %145 = vmatprep.subr.mxu0 0.0
    %146 = vmatpush1.msra.mxu0 0.0
    %147 = vmatprep.subr.mxu0 0.0
    %148 = vmatpush1.msra.mxu0 0.0
    %149 = vmatprep.subr.mxu0 0.0
    %150 = vmatpush1.msra.mxu0 0.0
    %151 = vmatprep.subr.mxu0 0.0
    %152 = vmatpush1.msra.mxu0 0.0
    %153 = vmatprep.subr.mxu0 0.0
    %154 = vmatpush1.msra.mxu0 0.0
    %155 = vmatprep.subr.mxu0 0.0
    %156 = vmatpush1.msra.mxu0 0.0
    %157 = vmatprep.subr.mxu0 0.0
    %158 = vmatpush1.msra.mxu0 0.0
    %159 = vmatprep.subr.mxu0 0.0
    %160 = vmatpush1.msra.mxu0 0.0
    %161 = vmatprep.subr.mxu0 0.0
    %162 = vmatpush1.msra.mxu0 0.0
    %163 = vmatprep.subr.mxu0 0.0
    %164 = vmatpush1.msra.mxu0 0.0
    %165 = vmatprep.subr.mxu0 0.0
    %166 = vmatpush1.msra.mxu0 0.0
    %167 = vmatprep.mubr.f32.mxu0 0.0
    %168 = vmatmul.mubr.f32.gmra.mrb[0].mxu0 %v94
    %v169 = vpop.f32.mrb[0].mxu0
    %v170 = vadd.f32 %v101, %v169
    %v171 = vpop.f32.mrb[0].mxu0
    %172 = vmatprep.mubr.f32.mxu0 0.0
    %173 = vmatmul.mubr.f32.gmra.mrb[0].mxu0 %v95
    %v174 = vpop.f32.mrb[0].mxu0
    %v175 = vadd.f32 %v101, %v174
    %v176 = vpop.f32.mrb[0].mxu0
    %177 = vdwg.mxu0
    %v178 = vmax.f32 %v170, 0.0
    %v179 = vmax.f32 %v175, 0.0
    %v180 = vld [vmem:[%s4] sm:$0x1]
    %v182 = vlaneseq
    %v183 = vshrl.u32 %v182, 7
    %v184 = vsub.s32 0, %v183
    %v185 = vrot.slane %v180, %v184
    %187 = vmatprep.subr.mxu0 0.0
    %188 = vmatpush1.msra.mxu0 %v78
    %189 = vmatprep.subr.mxu0 0.0
    %190 = vmatpush1.msra.mxu0 %v79
    %191 = vmatprep.subr.mxu0 0.0
    %192 = vmatpush1.msra.mxu0 %v80
    %193 = vmatprep.subr.mxu0 0.0
    %194 = vmatpush1.msra.mxu0 %v81
    %195 = vmatprep.subr.mxu0 0.0
    %196 = vmatpush1.msra.mxu0 %v82
    %197 = vmatprep.subr.mxu0 0.0
    %198 = vmatpush1.msra.mxu0 %v83
    %199 = vmatprep.subr.mxu0 0.0
    %200 = vmatpush1.msra.mxu0 %v84
    %201 = vmatprep.subr.mxu0 0.0
    %202 = vmatpush1.msra.mxu0 %v85
    %203 = vmatprep.subr.mxu0 0.0
    %204 = vmatpush1.msra.mxu0 %v86
    %205 = vmatprep.subr.mxu0 0.0
    %206 = vmatpush1.msra.mxu0 %v87
    %207 = vmatprep.subr.mxu0 0.0
    %208 = vmatpush1.msra.mxu0 %v88
    %209 = vmatprep.subr.mxu0 0.0
    %210 = vmatpush1.msra.mxu0 %v89
    %211 = vmatprep.subr.mxu0 0.0
    %212 = vmatpush1.msra.mxu0 %v90
    %213 = vmatprep.subr.mxu0 0.0
    %214 = vmatpush1.msra.mxu0 %v91
    %215 = vmatprep.subr.mxu0 0.0
    %216 = vmatpush1.msra.mxu0 %v92
    %217 = vmatprep.subr.mxu0 0.0
    %218 = vmatpush1.msra.mxu0 %v93
    %219 = vmatprep.subr.mxu0 0.0
    %220 = vmatpush1.msra.mxu0 0.0
    %221 = vmatprep.subr.mxu0 0.0
    %222 = vmatpush1.msra.mxu0 0.0
    %223 = vmatprep.subr.mxu0 0.0
    %224 = vmatpush1.msra.mxu0 0.0
    %225 = vmatprep.subr.mxu0 0.0
    %226 = vmatpush1.msra.mxu0 0.0
    %227 = vmatprep.subr.mxu0 0.0
    %228 = vmatpush1.msra.mxu0 0.0
    %229 = vmatprep.subr.mxu0 0.0
    %230 = vmatpush1.msra.mxu0 0.0
    %231 = vmatprep.subr.mxu0 0.0
    %232 = vmatpush1.msra.mxu0 0.0
    %233 = vmatprep.subr.mxu0 0.0
    %234 = vmatpush1.msra.mxu0 0.0
    %235 = vmatprep.subr.mxu0 0.0
    %236 = vmatpush1.msra.mxu0 0.0
    %237 = vmatprep.subr.mxu0 0.0
    %238 = vmatpush1.msra.mxu0 0.0
    %239 = vmatprep.subr.mxu0 0.0
    %240 = vmatpush1.msra.mxu0 0.0
    %241 = vmatprep.subr.mxu0 0.0
    %242 = vmatpush1.msra.mxu0 0.0
    %243 = vmatprep.subr.mxu0 0.0
    %244 = vmatpush1.msra.mxu0 0.0
    %245 = vmatprep.subr.mxu0 0.0
    %246 = vmatpush1.msra.mxu0 0.0
    %247 = vmatprep.subr.mxu0 0.0
    %248 = vmatpush1.msra.mxu0 0.0
    %249 = vmatprep.subr.mxu0 0.0
    %250 = vmatpush1.msra.mxu0 0.0
    %251 = vmatprep.mubr.f32.mxu0 0.0
    %252 = vmatmul.mubr.f32.gmra.mrb[0].mxu0 %v178
    %v253 = vpop.f32.mrb[0].mxu0
    %v254 = vadd.f32 %v185, %v253
    %v255 = vpop.f32.mrb[0].mxu0
    %256 = vmatprep.mubr.f32.mxu0 0.0
    %257 = vmatmul.mubr.f32.gmra.mrb[0].mxu0 %v179
    %v258 = vpop.f32.mrb[0].mxu0
    %v259 = vadd.f32 %v185, %v258
    %v260 = vpop.f32.mrb[0].mxu0
    %261 = vdwg.mxu0
    %262 = vst [vmem:[#allocation8] sm:$0xff] %v254
    %263 = vst [vmem:[#allocation8 + $0x8] sm:$0xff] %v259
    // Predicated region
    $region34: #{tpu_custom_call.1} parent=1 // pred_check
      _
    $region35: #{tpu_custom_call.1} parent=1 // pred_check_branch
      %265 = sbr.rel (0) target = $region37
    $region36: #{tpu_custom_call.1} parent=1 // pred_region
      %s267 = ssub.s32 256, 256
      %268 = vsyncadd [#allocation4], %s267
      %s269 = sshll.u32 [#allocation8], 4
      %s270 = int_to_ptr.vmem [resolvable:$true] %s269
      %275 = dma.vmem_to_hbm [thread:$0]  %s270, 256, %s5, [#allocation4], 128, 128, 8
    $region37: #{tpu_custom_call.1} parent=1 // pred_fallthru
      _
    // Predicated region
    $region38: #{tpu_custom_call.1} parent=1 // pred_check
      _
    $region39: #{tpu_custom_call.1} parent=1 // pred_check_branch
      %277 = sbr.rel (0) target = $region41
    $region40: #{tpu_custom_call.1} parent=1 // pred_region
      %278 = dma.done [#allocation4], 256
    $region41: #{tpu_custom_call.1} parent=1 // pred_fallthru
      _
    %279 = vsyncpa [#allocation3], 1
    %280 = vsyncpa [#allocation6], 1
    %281 = vsyncpa [#allocation4], 1

</llo_original>
